<compile_context>
chip_gen: v6e
topology: v6e:2x2x1
jax: 0.10.0
libtpu: 0.0.40
codegen_flags: <defaults>
</compile_context>

<pallas_src>
import jax
import jax.numpy as jnp
from jax.experimental import pallas as pl
from jax.experimental.pallas import tpu as pltpu


def _elewise_fusion1_kernel(x_ref, o_ref):
    x = x_ref[...]
    t = (x + x - 3.0) * 0.5          # (x + x - 3) / 2, /2 == *0.5 exactly
    o_ref[...] = jnp.maximum(t, 0.0) * t


def _elewise_fusion1_ref(x):
    t = (x + x - 3.0) * 0.5
    return jnp.maximum(t, 0.0) * t


def _tpu_tuning():
    """Per-generation (target block bytes, vmem_limit_bytes or None, megacore)."""
    try:
        kind = jax.devices()[0].device_kind.lower()
    except Exception:
        kind = ""
    if "v5" in kind:
        # v5e: 16 MiB default scoped VMEM; 4 x 3 MiB double-buffered in+out fits.
        return 3 * 1024 * 1024, None, False
    if "v6" in kind:
        # v6e: 32 MiB default scoped VMEM; 4 x 6 MiB = 24 MiB leaves headroom.
        return 6 * 1024 * 1024, 32 << 20, False
    if "7" in kind:
        # v7x: 64 MiB physical VMEM, 2 TCs/chip; raise scoped limit for 8 MiB blocks.
        return 8 * 1024 * 1024, 40 << 20, True
    # Unknown generation: conservative default.
    return 4 * 1024 * 1024, 32 << 20, False


def elewise_fusion1(x: jax.Array) -> jax.Array:
    orig_shape = x.shape
    dtype = x.dtype
    n = x.size
    itemsize = jnp.dtype(dtype).itemsize

    x_flat = x.reshape(-1)

    # Widest lane-dense last dim that divides n exactly -> no head/tail split.
    lane = None
    for cand in (1024, 512, 256, 128):
        if n % cand == 0:
            lane = cand
            break

    if lane is not None:
        n_head, n_tail = n, 0
    else:
        lane = 128
        n_head = (n // lane) * lane
        n_tail = n - n_head

    if n_head == 0:
        # Tiny (<128 element) input: no lane-aligned slab, plain jnp is optimal.
        return _elewise_fusion1_ref(x_flat).reshape(orig_shape)

    head = x_flat[:n_head] if n_tail else x_flat
    rows = n_head // lane
    x2d = head.reshape(rows, lane)

    target_bytes, vmem_limit, is_megacore = _tpu_tuning()

    # Packed sublane multiple: 8 for f32, 16 for bf16, 32 for int8/fp8.
    sub = max(8, 32 // itemsize)
    block_rows = max(sub, (target_bytes // (lane * itemsize)) // sub * sub)
    if rows <= block_rows:
        block_rows = rows  # full first dim is always a legal block shape
    nblocks = pl.cdiv(rows, block_rows)

    # v7x megacore balance: prefer an even number of blocks when there are >1.
    if is_megacore and nblocks > 1 and nblocks % 2 == 1:
        cand = pl.cdiv(rows, nblocks + 1)
        cand_rows = max(sub, ((cand + sub - 1) // sub) * sub)
        new_nblocks = pl.cdiv(rows, cand_rows)
        if new_nblocks % 2 == 0:
            block_rows, nblocks = cand_rows, new_nblocks

    cp_kwargs = dict(dimension_semantics=("parallel",))
    if vmem_limit is not None:
        cp_kwargs["vmem_limit_bytes"] = vmem_limit

    out2d = pl.pallas_call(
        _elewise_fusion1_kernel,
        out_shape=jax.ShapeDtypeStruct((rows, lane), dtype),
        grid_spec=pltpu.PrefetchScalarGridSpec(
            num_scalar_prefetch=0,
            grid=(nblocks,),
            in_specs=[pl.BlockSpec((block_rows, lane), lambda i: (i, 0))],
            out_specs=pl.BlockSpec((block_rows, lane), lambda i: (i, 0)),
        ),
        compiler_params=pltpu.CompilerParams(**cp_kwargs),
        cost_estimate=pl.CostEstimate(
            flops=5 * n_head,
            transcendentals=0,
            bytes_accessed=2 * n_head * itemsize,
        ),
    )(x2d)

    out_flat = out2d.reshape(-1)
    if n_tail:
        # <128-element tail handled in plain jnp (avoids pad + slice HBM passes).
        tail_out = _elewise_fusion1_ref(x_flat[n_head:])
        out_flat = jnp.concatenate([out_flat, tail_out])
    return out_flat.reshape(orig_shape)


if __name__ == "__main__":
    key = jax.random.PRNGKey(0)
    x = jax.random.normal(key, (2, 4, 16, 16), dtype=jnp.float32)

    out = elewise_fusion1(x)
    jax.block_until_ready(out)

    # Reference mirroring the PyTorch forward exactly.
    t = (x + x - 3.0) / 2.0
    ref = jnp.maximum(t, 0.0) * t
    assert out.shape == x.shape
    assert out.dtype == x.dtype
    assert jnp.allclose(out, ref, atol=1e-6, rtol=1e-6)

    print("KERNEL_OK")
</pallas_src>

<mosaic_0001>
module attributes {stable_mosaic.version = 11 : i64} {
  func.func @_elewise_fusion1_kernel(%arg0: i32, %arg1: memref<2x1024xf32, #tpu.memory_space<vmem>>, %arg2: memref<2x1024xf32, #tpu.memory_space<vmem>>) attributes {dimension_semantics = [#tpu.dimension_semantics<parallel>], iteration_bounds = array<i64: 1>, scalar_prefetch = 0 : i64, scratch_operands = 0 : i64, tpu.core_type = #tpu.core_type<tc>, window_params = [{transform_indices = @transform_0, window_bounds = array<i64: 2, 1024>}, {transform_indices = @transform_1, window_bounds = array<i64: 2, 1024>}]} {
    %c0 = arith.constant 0 : index
    %c0_0 = arith.constant 0 : index
    %0 = vector.load %arg1[%c0, %c0_0] : memref<2x1024xf32, #tpu.memory_space<vmem>>, vector<2x1024xf32>
    %1 = arith.addf %0, %0 : vector<2x1024xf32>
    %cst = arith.constant 3.000000e+00 : f32
    %2 = vector.broadcast %cst : f32 to vector<2x1024xf32>
    %3 = arith.subf %1, %2 : vector<2x1024xf32>
    %cst_1 = arith.constant 5.000000e-01 : f32
    %4 = vector.broadcast %cst_1 : f32 to vector<2x1024xf32>
    %5 = arith.mulf %3, %4 : vector<2x1024xf32>
    %cst_2 = arith.constant 0.000000e+00 : f32
    %6 = vector.broadcast %cst_2 : f32 to vector<2x1024xf32>
    %7 = arith.maximumf %5, %6 : vector<2x1024xf32>
    %8 = arith.mulf %7, %5 : vector<2x1024xf32>
    %c0_3 = arith.constant 0 : index
    %c0_4 = arith.constant 0 : index
    %9 = vector.load %arg2[%c0_3, %c0_4] : memref<2x1024xf32, #tpu.memory_space<vmem>>, vector<2x1024xf32>
    tpu.vector_store %arg2[%c0_3, %c0_4], %8 {strides = array<i32>} : memref<2x1024xf32, #tpu.memory_space<vmem>>, vector<2x1024xf32>,
    return
  }
  func.func @transform_0(%arg0: i32) -> (i32, i32) {
    %c0_i32 = arith.constant 0 : i32
    %c0_i32_0 = arith.constant 0 : i32
    return %arg0, %c0_i32 : i32, i32
  }
  func.func @transform_1(%arg0: i32) -> (i32, i32) {
    %c0_i32 = arith.constant 0 : i32
    %c0_i32_0 = arith.constant 0 : i32
    return %arg0, %c0_i32 : i32, i32
  }
}

</mosaic_0001>

<llo_original>
// kernel: tpu_custom_call.1
$region0: #{tpu_custom_call.1}
  #allocation0 [shape = 'u32[]', space=smem, size = 0x4, offset = 0x4, fixed_abs, tag = 'smem constant byte address 0x4 - core index']
  #allocation1 [shape = 'u32[144,128]{1,0:T(1,128)}', space=vmem, size = 0x12000, scoped, tag = 'internal scratch']
  %s0 = inlined_call_operand.hbm [shape: f32[2,1024], index: 0, kind: input, shape index: {}]
  %s1 = inlined_call_operand.hbm [shape: f32[2,1024], index: 1, kind: output, shape index: {}]
  %s2 = sld [smem:[#allocation0]]
  $region18: #{tpu_custom_call.1} parent=0
    _
  %s4 = ssub.s32 1, %s2
  %s5 = scalar_select 0, %s4, %s2
  $region1: #{tpu_custom_call.1} parent=0
    #allocation2 [shape = 'u8[8192]{0}', space=vmem, size = 0x2000, scoped, tag = 'input window, operand 0, single buffered']
    #allocation3 [shape = 's32[1]{0}', space=sflag, size = 0x4, scoped, tag = 'scoped memory for tpu_custom_call.1']
    #allocation4 [shape = 's32[1]{0}', space=sflag, size = 0x4, scoped, tag = 'scoped memory for tpu_custom_call.1']
    #allocation5 [shape = 'u8[8192]{0}', space=vmem, size = 0x2000, scoped, tag = 'output window, operand 0, single buffered']
    %6 = vsyncpa [#allocation3], 0
    %7 = vsyncpa [#allocation4], 0
    // Predicated region
    $region2: #{tpu_custom_call.1} parent=1 // pred_check
      _
    $region3: #{tpu_custom_call.1} parent=1 // pred_check_branch
      %9 = sbr.rel (0) target = $region5
    $region4: #{tpu_custom_call.1} parent=1 // pred_region
      %s11 = ssub.s32 256, 256
      %12 = vsyncadd [#allocation3], %s11
      %s14 = sshll.u32 [#allocation2], 4
      %s15 = int_to_ptr.vmem [resolvable:$true] %s14
      %17 = dma.hbm_to_vmem [thread:$0]  %s0, 256, %s15, [#allocation3]
    $region5: #{tpu_custom_call.1} parent=1 // pred_fallthru
      _
    // Predicated region
    $region6: #{tpu_custom_call.1} parent=1 // pred_check
      _
    $region7: #{tpu_custom_call.1} parent=1 // pred_check_branch
      %19 = sbr.rel (0) target = $region9
    $region8: #{tpu_custom_call.1} parent=1 // pred_region
      %20 = dma.done [#allocation3], 256
    $region9: #{tpu_custom_call.1} parent=1 // pred_fallthru
      _
    %v21 = vld [vmem:[#allocation2] sm:$0xff]
    %v22 = vld [vmem:[#allocation2 + $0x8] sm:$0xff]
    %v23 = vadd.f32 %v21, %v21
    %v24 = vadd.f32 %v22, %v22
    %v25 = vsub.f32 %v23, 3.0
    %v26 = vsub.f32 %v24, 3.0
    %v27 = vmul.f32 %v25, 0.5
    %v28 = vmul.f32 %v26, 0.5
    %v29 = vmax.f32 %v27, 0.0
    %v30 = vmax.f32 %v28, 0.0
    %v31 = vmul.f32 %v29, %v27
    %v32 = vmul.f32 %v30, %v28
    %33 = vst [vmem:[#allocation5] sm:$0xff] %v31
    %34 = vst [vmem:[#allocation5 + $0x8] sm:$0xff] %v32
    // Predicated region
    $region10: #{tpu_custom_call.1} parent=1 // pred_check
      _
    $region11: #{tpu_custom_call.1} parent=1 // pred_check_branch
      %36 = sbr.rel (0) target = $region13
    $region12: #{tpu_custom_call.1} parent=1 // pred_region
      %s38 = ssub.s32 256, 256
      %39 = vsyncadd [#allocation4], %s38
      %s41 = sshll.u32 [#allocation5], 4
      %s42 = int_to_ptr.vmem [resolvable:$true] %s41
      %44 = dma.vmem_to_hbm [thread:$0]  %s42, 256, %s1, [#allocation4]
    $region13: #{tpu_custom_call.1} parent=1 // pred_fallthru
      _
    // Predicated region
    $region14: #{tpu_custom_call.1} parent=1 // pred_check
      _
    $region15: #{tpu_custom_call.1} parent=1 // pred_check_branch
      %46 = sbr.rel (0) target = $region17
    $region16: #{tpu_custom_call.1} parent=1 // pred_region
      %47 = dma.done [#allocation4], 256
    $region17: #{tpu_custom_call.1} parent=1 // pred_fallthru
      _
    %48 = vsyncpa [#allocation3], 1
    %49 = vsyncpa [#allocation4], 1

</llo_original>
